<compile_context>
chip_gen: v6e
topology: v6e:2x2x1
jax: 0.10.0
libtpu: 0.0.40
codegen_flags: <defaults>
</compile_context>

<pallas_src>
import jax
import jax.numpy as jnp
from jax.experimental import pallas as pl
from jax.experimental.pallas import tpu as pltpu


def _round_up(x, m):
    return ((x + m - 1) // m) * m


def _choose_tile_m(n, tile_m_max):
    """Balanced batch tile.

    - If one tile suffices, use the full batch (block dim == array dim is always legal,
      even when not a multiple of 8) -> zero padded rows.
    - Otherwise pick ~n / ceil(n / tile_m_max) rows rounded up to a multiple of 8, so the
      ragged last tile wastes at most 7 rows (instead of up to ~tile_m).
    """
    if n <= tile_m_max:
        return n
    n_tiles = pl.cdiv(n, tile_m_max)
    return min(_round_up(pl.cdiv(n, n_tiles), 8), tile_m_max)


def _select_views(fv1, fv2, fv3, fv4, num_view, final_model):
    """Identical view-selection logic to CONTR_FINAL.forward (the concat itself is
    folded into the kernel via the row-split W_out1)."""
    if num_view == 3:
        return (fv1, fv2, fv3, fv4) if final_model else (fv1, fv2, fv3)
    elif final_model:
        return (fv1, fv2, fv4)
    return (fv1, fv2)


def _make_contr_final_kernel(n_views, compute_dtype):
    def kernel(*refs):
        fv_refs = refs[:n_views]
        w1_refs = refs[n_views:2 * n_views]
        b1_ref, w2_ref, b2_ref, w3_ref, b3_ref, out_ref = refs[2 * n_views:]

        # ---- layer 1: concat folded into per-view partial matmuls (MXU, f32 acc) ----
        # Views arrive raw from HBM (f32); the bf16 operand cast happens here, not as a
        # separate XLA pre-pass in the wrapper.
        # TODO(synk): fuse the n_views K=d dots into a single K=n_views*d dot via an
        # in-kernel lane concat for extra MXU headroom (kernel is HBM-bound today).
        h = jnp.dot(fv_refs[0][...].astype(compute_dtype), w1_refs[0][...],
                    preferred_element_type=jnp.float32)
        for v in range(1, n_views):
            h = h + jnp.dot(fv_refs[v][...].astype(compute_dtype), w1_refs[v][...],
                            preferred_element_type=jnp.float32)
        h = jnp.maximum(h + b1_ref[...], 0.0)   # bias add + ReLU in f32
        # dropout = identity (eval mode)

        # ---- layer 2: W_out2 + ReLU ----
        h = jnp.dot(h.astype(compute_dtype), w2_ref[...],
                    preferred_element_type=jnp.float32)
        h = jnp.maximum(h + b2_ref[...], 0.0)
        # dropout = identity (eval mode)

        # ---- layer 3: logits, stored at true class width (no 128-lane padded writeback) ----
        z = jnp.dot(h.astype(compute_dtype), w3_ref[...],
                    preferred_element_type=jnp.float32)
        out_ref[...] = (z + b3_ref[...]).astype(out_ref.dtype)

    return kernel


def prepack_params(params, gnn_hidden_dim, num_view=3, final_model=True,
                   compute_dtype=jnp.bfloat16):
    """One-time weight prep, hoisted off the per-call hot path:
       - pad hidden lane dims (h1, h2) to multiples of 128 (lane-dense intermediate dots),
       - cast MXU operands to bf16 (biases stay f32),
       - split W_out1 row-wise per view so the concat never materializes in HBM.
       The logits dim is NOT padded: the kernel writes (tile_m, num_classes) directly."""
    w1, b1, w2, b2, w3, b3 = params
    n_views = num_view + int(final_model)
    d = gnn_hidden_dim
    h1, h2 = w1.shape[1], w2.shape[1]
    assert w1.shape[0] == n_views * d, "W_out1 input dim must match concatenated views"

    h1p, h2p = _round_up(h1, 128), _round_up(h2, 128)
    w1p = jnp.pad(w1, ((0, 0), (0, h1p - h1))).astype(compute_dtype)
    w2p = jnp.pad(w2, ((0, h1p - h1), (0, h2p - h2))).astype(compute_dtype)
    w3p = jnp.pad(w3, ((0, h2p - h2), (0, 0))).astype(compute_dtype)   # lanes = num_classes
    b1p = jnp.pad(b1, ((0, 0), (0, h1p - h1))).astype(jnp.float32)
    b2p = jnp.pad(b2, ((0, 0), (0, h2p - h2))).astype(jnp.float32)
    b3p = b3.astype(jnp.float32)
    w1_blocks = tuple(w1p[v * d:(v + 1) * d, :] for v in range(n_views))
    return (w1_blocks, b1p, w2p, b2p, w3p, b3p)


def contr_final_forward(fv1, fv2, fv3, fv4, packed, num_view=3, final_model=True,
                        *, tile_m_max=2048, compute_dtype=jnp.bfloat16,
                        core_parallel=False):
    """Fused 3-layer MLP head. Mirrors CONTR_FINAL.forward (eval mode).
    `packed` comes from prepack_params (weights already padded/cast/split)."""
    views = _select_views(fv1, fv2, fv3, fv4, num_view, final_model)
    n_views = len(views)
    w1_blocks, b1p, w2p, b2p, w3p, b3p = packed
    assert len(w1_blocks) == n_views, "packed params do not match num_view/final_model"

    n, d = views[0].shape
    h1p, h2p = w2p.shape[0], w3p.shape[0]
    nc = w3p.shape[1]

    tile_m = _choose_tile_m(n, tile_m_max)
    grid = (pl.cdiv(n, tile_m),)          # ragged last tile handled by Pallas (masked edge)

    row_map = lambda i: (i, 0)
    const_map = lambda i: (0, 0)          # weights/biases resident in VMEM across steps

    in_specs = (
        [pl.BlockSpec((tile_m, d), row_map) for _ in range(n_views)]   # raw f32 views
        + [pl.BlockSpec((d, h1p), const_map) for _ in range(n_views)]  # W1 row blocks
        + [pl.BlockSpec((1, h1p), const_map),                          # b1
           pl.BlockSpec((h1p, h2p), const_map),                        # w2
           pl.BlockSpec((1, h2p), const_map),                          # b2
           pl.BlockSpec((h2p, nc), const_map),                         # w3 (true class width)
           pl.BlockSpec((1, nc), const_map)]                           # b3
    )
    out_spec = pl.BlockSpec((tile_m, nc), row_map)

    # On v7x set core_parallel=True to shard the batch grid across both TensorCores.
    batch_sem = pltpu.CORE_PARALLEL if core_parallel else "parallel"

    kernel = _make_contr_final_kernel(n_views, compute_dtype)

    return pl.pallas_call(
        kernel,
        out_shape=jax.ShapeDtypeStruct((n, nc), jnp.float32),
        grid=grid,
        in_specs=in_specs,
        out_specs=out_spec,
        compiler_params=pltpu.CompilerParams(
            dimension_semantics=(batch_sem,),
            # Footprint is tiny (<8 MiB even at tile_m=2048); 32 MiB is safe on
            # v5e/v6e (128 MiB physical) and leaves headroom on v7x (64 MiB physical).
            vmem_limit_bytes=32 * 1024 * 1024,
        ),
    )(*views, *w1_blocks, b1p, w2p, b2p, w3p, b3p)


def init_params(key, gnn_hidden_dim, num_classes, num_view=3, final_model=True):
    """Deterministic parameter init matching the nn.Linear shapes.
    PyTorch stores Linear weight as (out, in); we keep them as (in, out)."""
    in1 = (num_view + int(final_model)) * gnn_hidden_dim
    h1 = gnn_hidden_dim
    h2 = gnn_hidden_dim // 2
    ks = jax.random.split(key, 6)
    scale = 0.1
    w1 = scale * jax.random.normal(ks[0], (in1, h1), jnp.float32)
    b1 = scale * jax.random.normal(ks[1], (1, h1), jnp.float32)
    w2 = scale * jax.random.normal(ks[2], (h1, h2), jnp.float32)
    b2 = scale * jax.random.normal(ks[3], (1, h2), jnp.float32)
    w3 = scale * jax.random.normal(ks[4], (h2, num_classes), jnp.float32)
    b3 = scale * jax.random.normal(ks[5], (1, num_classes), jnp.float32)
    return (w1, b1, w2, b2, w3, b3)


def reference_forward(fv1, fv2, fv3, fv4, params, num_view=3, final_model=True):
    """Pure-JAX f32 reference (eval mode, dropout = identity)."""
    w1, b1, w2, b2, w3, b3 = params
    y = jnp.concatenate(_select_views(fv1, fv2, fv3, fv4, num_view, final_model), axis=1)
    h = jnp.maximum(y @ w1 + b1, 0.0)
    h = jnp.maximum(h @ w2 + b2, 0.0)
    return h @ w3 + b3


if __name__ == "__main__":
    # Small, forward-consistent shapes:
    #   batch=8, gnn_hidden_dim=32, num_view=3, final_model=True, num_classes=4
    batch = 8
    gnn_hidden_dim = 32
    num_classes = 4
    num_view = 3
    final_model = True

    key = jax.random.PRNGKey(0)
    k_in, k_par = jax.random.split(key)
    kf = jax.random.split(k_in, 4)
    fv1 = jax.random.normal(kf[0], (batch, gnn_hidden_dim), jnp.float32)
    fv2 = jax.random.normal(kf[1], (batch, gnn_hidden_dim), jnp.float32)
    fv3 = jax.random.normal(kf[2], (batch, gnn_hidden_dim), jnp.float32)
    fv4 = jax.random.normal(kf[3], (batch, gnn_hidden_dim), jnp.float32)

    params = init_params(k_par, gnn_hidden_dim, num_classes, num_view, final_model)
    packed = prepack_params(params, gnn_hidden_dim, num_view, final_model)
    packed = jax.block_until_ready(packed)   # one-time prepack, off the hot path

    # --- main check ---
    z = contr_final_forward(fv1, fv2, fv3, fv4, packed, num_view, final_model)
    z = jax.block_until_ready(z)
    z_ref = reference_forward(fv1, fv2, fv3, fv4, params, num_view, final_model)
    assert z.shape == (batch, num_classes)
    # bf16 matmuls with f32 accumulation -> loose-ish tolerance vs the f32 reference.
    assert jnp.allclose(z, z_ref, atol=5e-2, rtol=5e-2), float(jnp.max(jnp.abs(z - z_ref)))

    # --- ragged-batch check (exercises the multi-tile grid + masked edge writeback) ---
    n2 = 13
    k2 = jax.random.split(key, 5)[4]
    kg = jax.random.split(k2, 4)
    g1, g2, g3, g4 = (jax.random.normal(kg[i], (n2, gnn_hidden_dim), jnp.float32)
                      for i in range(4))
    z2 = contr_final_forward(g1, g2, g3, g4, packed, num_view, final_model, tile_m_max=8)
    z2 = jax.block_until_ready(z2)
    z2_ref = reference_forward(g1, g2, g3, g4, params, num_view, final_model)
    assert z2.shape == (n2, num_classes)
    assert jnp.allclose(z2, z2_ref, atol=5e-2, rtol=5e-2), float(jnp.max(jnp.abs(z2 - z2_ref)))

    print("KERNEL_OK")
</pallas_src>

<mosaic_0001>
module attributes {stable_mosaic.version = 11 : i64} {
  func.func @kernel(%arg0: i32, %arg1: memref<8x32xf32, #tpu.memory_space<vmem>>, %arg2: memref<8x32xf32, #tpu.memory_space<vmem>>, %arg3: memref<8x32xf32, #tpu.memory_space<vmem>>, %arg4: memref<8x32xf32, #tpu.memory_space<vmem>>, %arg5: memref<32x128xbf16, #tpu.memory_space<vmem>>, %arg6: memref<32x128xbf16, #tpu.memory_space<vmem>>, %arg7: memref<32x128xbf16, #tpu.memory_space<vmem>>, %arg8: memref<32x128xbf16, #tpu.memory_space<vmem>>, %arg9: memref<1x128xf32, #tpu.memory_space<vmem>>, %arg10: memref<128x128xbf16, #tpu.memory_space<vmem>>, %arg11: memref<1x128xf32, #tpu.memory_space<vmem>>, %arg12: memref<128x4xbf16, #tpu.memory_space<vmem>>, %arg13: memref<1x4xf32, #tpu.memory_space<vmem>>, %arg14: memref<8x4xf32, #tpu.memory_space<vmem>>) attributes {dimension_semantics = [#tpu.dimension_semantics<parallel>], iteration_bounds = array<i64: 1>, scalar_prefetch = 0 : i64, scratch_operands = 0 : i64, tpu.core_type = #tpu.core_type<tc>, window_params = [{transform_indices = @transform_0, window_bounds = array<i64: 8, 32>}, {transform_indices = @transform_1, window_bounds = array<i64: 8, 32>}, {transform_indices = @transform_2, window_bounds = array<i64: 8, 32>}, {transform_indices = @transform_3, window_bounds = array<i64: 8, 32>}, {pipeline_mode = #tpu.pipeline_mode<synchronous>, transform_indices = @transform_4, window_bounds = array<i64: 32, 128>}, {pipeline_mode = #tpu.pipeline_mode<synchronous>, transform_indices = @transform_5, window_bounds = array<i64: 32, 128>}, {pipeline_mode = #tpu.pipeline_mode<synchronous>, transform_indices = @transform_6, window_bounds = array<i64: 32, 128>}, {pipeline_mode = #tpu.pipeline_mode<synchronous>, transform_indices = @transform_7, window_bounds = array<i64: 32, 128>}, {pipeline_mode = #tpu.pipeline_mode<synchronous>, transform_indices = @transform_8, window_bounds = array<i64: 1, 128>}, {pipeline_mode = #tpu.pipeline_mode<synchronous>, transform_indices = @transform_9, window_bounds = array<i64: 128, 128>}, {pipeline_mode = #tpu.pipeline_mode<synchronous>, transform_indices = @transform_10, window_bounds = array<i64: 1, 128>}, {pipeline_mode = #tpu.pipeline_mode<synchronous>, transform_indices = @transform_11, window_bounds = array<i64: 128, 4>}, {pipeline_mode = #tpu.pipeline_mode<synchronous>, transform_indices = @transform_12, window_bounds = array<i64: 1, 4>}, {transform_indices = @transform_13, window_bounds = array<i64: 8, 4>}]} {
    %c0 = arith.constant 0 : index
    %c0_0 = arith.constant 0 : index
    %0 = vector.load %arg1[%c0, %c0_0] : memref<8x32xf32, #tpu.memory_space<vmem>>, vector<8x32xf32>
    %1 = arith.truncf %0 : vector<8x32xf32> to vector<8x32xbf16>
    %c0_1 = arith.constant 0 : index
    %c0_2 = arith.constant 0 : index
    %2 = vector.load %arg5[%c0_1, %c0_2] : memref<32x128xbf16, #tpu.memory_space<vmem>>, vector<32x128xbf16>
    %cst = arith.constant dense<0.000000e+00> : vector<8x128xf32>
    %3 = tpu.matmul %1, %2, %cst {dimension_numbers = #tpu.dot_dimension_numbers<[1], [0], [0], [1], [0, 0, 1, 1], [], []>} : vector<8x32xbf16>, vector<32x128xbf16>, vector<8x128xf32> -> vector<8x128xf32>
    %c0_3 = arith.constant 0 : index
    %c0_4 = arith.constant 0 : index
    %4 = vector.load %arg2[%c0_3, %c0_4] : memref<8x32xf32, #tpu.memory_space<vmem>>, vector<8x32xf32>
    %5 = arith.truncf %4 : vector<8x32xf32> to vector<8x32xbf16>
    %c0_5 = arith.constant 0 : index
    %c0_6 = arith.constant 0 : index
    %6 = vector.load %arg6[%c0_5, %c0_6] : memref<32x128xbf16, #tpu.memory_space<vmem>>, vector<32x128xbf16>
    %cst_7 = arith.constant dense<0.000000e+00> : vector<8x128xf32>
    %7 = tpu.matmul %5, %6, %cst_7 {dimension_numbers = #tpu.dot_dimension_numbers<[1], [0], [0], [1], [0, 0, 1, 1], [], []>} : vector<8x32xbf16>, vector<32x128xbf16>, vector<8x128xf32> -> vector<8x128xf32>
    %8 = arith.addf %3, %7 : vector<8x128xf32>
    %c0_8 = arith.constant 0 : index
    %c0_9 = arith.constant 0 : index
    %9 = vector.load %arg3[%c0_8, %c0_9] : memref<8x32xf32, #tpu.memory_space<vmem>>, vector<8x32xf32>
    %10 = arith.truncf %9 : vector<8x32xf32> to vector<8x32xbf16>
    %c0_10 = arith.constant 0 : index
    %c0_11 = arith.constant 0 : index
    %11 = vector.load %arg7[%c0_10, %c0_11] : memref<32x128xbf16, #tpu.memory_space<vmem>>, vector<32x128xbf16>
    %cst_12 = arith.constant dense<0.000000e+00> : vector<8x128xf32>
    %12 = tpu.matmul %10, %11, %cst_12 {dimension_numbers = #tpu.dot_dimension_numbers<[1], [0], [0], [1], [0, 0, 1, 1], [], []>} : vector<8x32xbf16>, vector<32x128xbf16>, vector<8x128xf32> -> vector<8x128xf32>
    %13 = arith.addf %8, %12 : vector<8x128xf32>
    %c0_13 = arith.constant 0 : index
    %c0_14 = arith.constant 0 : index
    %14 = vector.load %arg4[%c0_13, %c0_14] : memref<8x32xf32, #tpu.memory_space<vmem>>, vector<8x32xf32>
    %15 = arith.truncf %14 : vector<8x32xf32> to vector<8x32xbf16>
    %c0_15 = arith.constant 0 : index
    %c0_16 = arith.constant 0 : index
    %16 = vector.load %arg8[%c0_15, %c0_16] : memref<32x128xbf16, #tpu.memory_space<vmem>>, vector<32x128xbf16>
    %cst_17 = arith.constant dense<0.000000e+00> : vector<8x128xf32>
    %17 = tpu.matmul %15, %16, %cst_17 {dimension_numbers = #tpu.dot_dimension_numbers<[1], [0], [0], [1], [0, 0, 1, 1], [], []>} : vector<8x32xbf16>, vector<32x128xbf16>, vector<8x128xf32> -> vector<8x128xf32>
    %18 = arith.addf %13, %17 : vector<8x128xf32>
    %c0_18 = arith.constant 0 : index
    %c0_19 = arith.constant 0 : index
    %19 = vector.load %arg9[%c0_18, %c0_19] : memref<1x128xf32, #tpu.memory_space<vmem>>, vector<1x128xf32>
    %20 = vector.broadcast %19 : vector<1x128xf32> to vector<8x128xf32>
    %21 = arith.addf %18, %20 : vector<8x128xf32>
    %cst_20 = arith.constant 0.000000e+00 : f32
    %22 = vector.broadcast %cst_20 : f32 to vector<8x128xf32>
    %23 = arith.maximumf %21, %22 : vector<8x128xf32>
    %24 = arith.truncf %23 : vector<8x128xf32> to vector<8x128xbf16>
    %c0_21 = arith.constant 0 : index
    %c0_22 = arith.constant 0 : index
    %25 = vector.load %arg10[%c0_21, %c0_22] : memref<128x128xbf16, #tpu.memory_space<vmem>>, vector<128x128xbf16>
    %cst_23 = arith.constant dense<0.000000e+00> : vector<8x128xf32>
    %26 = tpu.matmul %24, %25, %cst_23 {dimension_numbers = #tpu.dot_dimension_numbers<[1], [0], [0], [1], [0, 0, 1, 1], [], []>} : vector<8x128xbf16>, vector<128x128xbf16>, vector<8x128xf32> -> vector<8x128xf32>
    %c0_24 = arith.constant 0 : index
    %c0_25 = arith.constant 0 : index
    %27 = vector.load %arg11[%c0_24, %c0_25] : memref<1x128xf32, #tpu.memory_space<vmem>>, vector<1x128xf32>
    %28 = vector.broadcast %27 : vector<1x128xf32> to vector<8x128xf32>
    %29 = arith.addf %26, %28 : vector<8x128xf32>
    %cst_26 = arith.constant 0.000000e+00 : f32
    %30 = vector.broadcast %cst_26 : f32 to vector<8x128xf32>
    %31 = arith.maximumf %29, %30 : vector<8x128xf32>
    %32 = arith.truncf %31 : vector<8x128xf32> to vector<8x128xbf16>
    %c0_27 = arith.constant 0 : index
    %c0_28 = arith.constant 0 : index
    %33 = vector.load %arg12[%c0_27, %c0_28] : memref<128x4xbf16, #tpu.memory_space<vmem>>, vector<128x4xbf16>
    %cst_29 = arith.constant dense<0.000000e+00> : vector<8x4xf32>
    %34 = tpu.matmul %32, %33, %cst_29 {dimension_numbers = #tpu.dot_dimension_numbers<[1], [0], [0], [1], [0, 0, 1, 1], [], []>} : vector<8x128xbf16>, vector<128x4xbf16>, vector<8x4xf32> -> vector<8x4xf32>
    %c0_30 = arith.constant 0 : index
    %c0_31 = arith.constant 0 : index
    %35 = vector.load %arg13[%c0_30, %c0_31] : memref<1x4xf32, #tpu.memory_space<vmem>>, vector<1x4xf32>
    %36 = vector.broadcast %35 : vector<1x4xf32> to vector<8x4xf32>
    %37 = arith.addf %34, %36 : vector<8x4xf32>
    %c0_32 = arith.constant 0 : index
    %c0_33 = arith.constant 0 : index
    %38 = vector.load %arg14[%c0_32, %c0_33] : memref<8x4xf32, #tpu.memory_space<vmem>>, vector<8x4xf32>
    tpu.vector_store %arg14[%c0_32, %c0_33], %37 {strides = array<i32>} : memref<8x4xf32, #tpu.memory_space<vmem>>, vector<8x4xf32>,
    return
  }
  func.func @transform_0(%arg0: i32) -> (i32, i32) {
    %c0_i32 = arith.constant 0 : i32
    %c0_i32_0 = arith.constant 0 : i32
    return %arg0, %c0_i32 : i32, i32
  }
  func.func @transform_1(%arg0: i32) -> (i32, i32) {
    %c0_i32 = arith.constant 0 : i32
    %c0_i32_0 = arith.constant 0 : i32
    return %arg0, %c0_i32 : i32, i32
  }
  func.func @transform_2(%arg0: i32) -> (i32, i32) {
    %c0_i32 = arith.constant 0 : i32
    %c0_i32_0 = arith.constant 0 : i32
    return %arg0, %c0_i32 : i32, i32
  }
  func.func @transform_3(%arg0: i32) -> (i32, i32) {
    %c0_i32 = arith.constant 0 : i32
    %c0_i32_0 = arith.constant 0 : i32
    return %arg0, %c0_i32 : i32, i32
  }
  func.func @transform_4(%arg0: i32) -> (i32, i32) {
    %c0_i32 = arith.constant 0 : i32
    %c0_i32_0 = arith.constant 0 : i32
    %c0_i32_1 = arith.constant 0 : i32
    return %c0_i32, %c0_i32_0 : i32, i32
  }
  func.func @transform_5(%arg0: i32) -> (i32, i32) {
    %c0_i32 = arith.constant 0 : i32
    %c0_i32_0 = arith.constant 0 : i32
    %c0_i32_1 = arith.constant 0 : i32
    return %c0_i32, %c0_i32_0 : i32, i32
  }
  func.func @transform_6(%arg0: i32) -> (i32, i32) {
    %c0_i32 = arith.constant 0 : i32
    %c0_i32_0 = arith.constant 0 : i32
    %c0_i32_1 = arith.constant 0 : i32
    return %c0_i32, %c0_i32_0 : i32, i32
  }
  func.func @transform_7(%arg0: i32) -> (i32, i32) {
    %c0_i32 = arith.constant 0 : i32
    %c0_i32_0 = arith.constant 0 : i32
    %c0_i32_1 = arith.constant 0 : i32
    return %c0_i32, %c0_i32_0 : i32, i32
  }
  func.func @transform_8(%arg0: i32) -> (i32, i32) {
    %c0_i32 = arith.constant 0 : i32
    %c0_i32_0 = arith.constant 0 : i32
    %c0_i32_1 = arith.constant 0 : i32
    return %c0_i32, %c0_i32_0 : i32, i32
  }
  func.func @transform_9(%arg0: i32) -> (i32, i32) {
    %c0_i32 = arith.constant 0 : i32
    %c0_i32_0 = arith.constant 0 : i32
    %c0_i32_1 = arith.constant 0 : i32
    return %c0_i32, %c0_i32_0 : i32, i32
  }
  func.func @transform_10(%arg0: i32) -> (i32, i32) {
    %c0_i32 = arith.constant 0 : i32
    %c0_i32_0 = arith.constant 0 : i32
    %c0_i32_1 = arith.constant 0 : i32
    return %c0_i32, %c0_i32_0 : i32, i32
  }
  func.func @transform_11(%arg0: i32) -> (i32, i32) {
    %c0_i32 = arith.constant 0 : i32
    %c0_i32_0 = arith.constant 0 : i32
    %c0_i32_1 = arith.constant 0 : i32
    return %c0_i32, %c0_i32_0 : i32, i32
  }
  func.func @transform_12(%arg0: i32) -> (i32, i32) {
    %c0_i32 = arith.constant 0 : i32
    %c0_i32_0 = arith.constant 0 : i32
    %c0_i32_1 = arith.constant 0 : i32
    return %c0_i32, %c0_i32_0 : i32, i32
  }
  func.func @transform_13(%arg0: i32) -> (i32, i32) {
    %c0_i32 = arith.constant 0 : i32
    %c0_i32_0 = arith.constant 0 : i32
    return %arg0, %c0_i32 : i32, i32
  }
}

</mosaic_0001>

<llo_original>
// kernel: tpu_custom_call.1
$region0: #{tpu_custom_call.1}
  #allocation0 [shape = 'u32[]', space=smem, size = 0x4, offset = 0x4, fixed_abs, tag = 'smem constant byte address 0x4 - core index']
  #allocation1 [shape = 'u32[144,128]{1,0:T(1,128)}', space=vmem, size = 0x12000, scoped, tag = 'internal scratch']
  %s0 = inlined_call_operand.hbm [shape: f32[8,32], index: 0, kind: input, shape index: {}]
  %s1 = inlined_call_operand.hbm [shape: f32[8,32], index: 1, kind: input, shape index: {}]
  %s2 = inlined_call_operand.hbm [shape: f32[8,32], index: 2, kind: input, shape index: {}]
  %s3 = inlined_call_operand.hbm [shape: f32[8,32], index: 3, kind: input, shape index: {}]
  %s4 = inlined_call_operand.vmem [shape: bf16[32,128], index: 4, kind: input, shape index: {}]
  %s5 = inlined_call_operand.hbm [shape: bf16[32,128], index: 5, kind: input, shape index: {}]
  %s6 = inlined_call_operand.hbm [shape: bf16[32,128], index: 6, kind: input, shape index: {}]
  %s7 = inlined_call_operand.hbm [shape: bf16[32,128], index: 7, kind: input, shape index: {}]
  %s8 = inlined_call_operand.vmem [shape: f32[1,128], index: 8, kind: input, shape index: {}]
  %s9 = inlined_call_operand.vmem [shape: bf16[128,128], index: 9, kind: input, shape index: {}]
  %s10 = inlined_call_operand.vmem [shape: f32[1,128], index: 10, kind: input, shape index: {}]
  %s11 = inlined_call_operand.vmem [shape: bf16[128,4], index: 11, kind: input, shape index: {}]
  %s12 = inlined_call_operand.vmem [shape: f32[1,4], index: 12, kind: input, shape index: {}]
  %s13 = inlined_call_operand.vmem [shape: f32[8,4], index: 13, kind: output, shape index: {}]
  %s14 = sld [smem:[#allocation0]]
  $region90: #{tpu_custom_call.1} parent=0
    _
  %s16 = ssub.s32 1, %s14
  %s17 = scalar_select 0, %s16, %s14
  $region1: #{tpu_custom_call.1} parent=0
    #allocation2 [shape = 'u8[4096]{0}', space=vmem, size = 0x1000, scoped, tag = 'input window, operand 0, single buffered']
    #allocation3 [shape = 's32[1]{0}', space=sflag, size = 0x4, scoped, tag = 'scoped memory for tpu_custom_call.1']
    #allocation4 [shape = 'u8[4096]{0}', space=vmem, size = 0x1000, scoped, tag = 'input window, operand 1, single buffered']
    #allocation5 [shape = 's32[1]{0}', space=sflag, size = 0x4, scoped, tag = 'scoped memory for tpu_custom_call.1']
    #allocation6 [shape = 'u8[4096]{0}', space=vmem, size = 0x1000, scoped, tag = 'input window, operand 2, single buffered']
    #allocation7 [shape = 'u8[4096]{0}', space=vmem, size = 0x1000, scoped, tag = 'input window, operand 3, single buffered']
    #allocation8 [shape = 's32[1]{0}', space=sflag, size = 0x4, scoped, tag = 'scoped memory for tpu_custom_call.1']
    #allocation9 [shape = 'u8[8192]{0}', space=vmem, size = 0x2000, scoped, tag = 'input window, operand 5, single buffered']
    #allocation10 [shape = 'u8[8192]{0}', space=vmem, size = 0x2000, scoped, tag = 'input window, operand 6, single buffered']
    #allocation11 [shape = 's32[1]{0}', space=sflag, size = 0x4, scoped, tag = 'scoped memory for tpu_custom_call.1']
    #allocation12 [shape = 'u8[8192]{0}', space=vmem, size = 0x2000, scoped, tag = 'input window, operand 7, single buffered']
    %18 = vsyncpa [#allocation3], 0
    %19 = vsyncpa [#allocation5], 0
    %20 = vsyncpa [#allocation8], 0
    %21 = vsyncpa [#allocation11], 0
    // Predicated region
    $region2: #{tpu_custom_call.1} parent=1 // pred_check
      _
    $region3: #{tpu_custom_call.1} parent=1 // pred_check_branch
      %23 = sbr.rel (0) target = $region5
    $region4: #{tpu_custom_call.1} parent=1 // pred_region
      %s25 = ssub.s32 128, 128
      %26 = vsyncadd [#allocation3], %s25
      %s28 = sshll.u32 [#allocation2], 4
      %s29 = int_to_ptr.vmem [resolvable:$true] %s28
      %31 = dma.hbm_to_vmem [thread:$0]  %s0, 128, %s29, [#allocation3]
    $region5: #{tpu_custom_call.1} parent=1 // pred_fallthru
      _
    // Predicated region
    $region6: #{tpu_custom_call.1} parent=1 // pred_check
      _
    $region7: #{tpu_custom_call.1} parent=1 // pred_check_branch
      %33 = sbr.rel (0) target = $region9
    $region8: #{tpu_custom_call.1} parent=1 // pred_region
      %s35 = ssub.s32 128, 128
      %36 = vsyncadd [#allocation5], %s35
      %s38 = sshll.u32 [#allocation4], 4
      %s39 = int_to_ptr.vmem [resolvable:$true] %s38
      %41 = dma.hbm_to_vmem [thread:$0]  %s1, 128, %s39, [#allocation5]
    $region9: #{tpu_custom_call.1} parent=1 // pred_fallthru
      _
    // Predicated region
    $region10: #{tpu_custom_call.1} parent=1 // pred_check
      _
    $region11: #{tpu_custom_call.1} parent=1 // pred_check_branch
      %43 = sbr.rel (0) target = $region13
    $region12: #{tpu_custom_call.1} parent=1 // pred_region
      %s45 = ssub.s32 128, 128
      %46 = vsyncadd [#allocation5], %s45
      %s48 = sshll.u32 [#allocation6], 4
      %s49 = int_to_ptr.vmem [resolvable:$true] %s48
      %51 = dma.hbm_to_vmem [thread:$0]  %s2, 128, %s49, [#allocation5]
    $region13: #{tpu_custom_call.1} parent=1 // pred_fallthru
      _
    // Predicated region
    $region14: #{tpu_custom_call.1} parent=1 // pred_check
      _
    $region15: #{tpu_custom_call.1} parent=1 // pred_check_branch
      %53 = sbr.rel (0) target = $region17
    $region16: #{tpu_custom_call.1} parent=1 // pred_region
      %s55 = ssub.s32 128, 128
      %56 = vsyncadd [#allocation8], %s55
      %s58 = sshll.u32 [#allocation7], 4
      %s59 = int_to_ptr.vmem [resolvable:$true] %s58
      %61 = dma.hbm_to_vmem [thread:$0]  %s3, 128, %s59, [#allocation8]
    $region17: #{tpu_custom_call.1} parent=1 // pred_fallthru
      _
    // Predicated region
    $region18: #{tpu_custom_call.1} parent=1 // pred_check
      _
    $region19: #{tpu_custom_call.1} parent=1 // pred_check_branch
      %63 = sbr.rel (0) target = $region21
    $region20: #{tpu_custom_call.1} parent=1 // pred_region
      _
    $region21: #{tpu_custom_call.1} parent=1 // pred_fallthru
      _
    // Predicated region
    $region22: #{tpu_custom_call.1} parent=1 // pred_check
      _
    $region23: #{tpu_custom_call.1} parent=1 // pred_check_branch
      %65 = sbr.rel (0) target = $region25
    $region24: #{tpu_custom_call.1} parent=1 // pred_region
      %s67 = ssub.s32 256, 256
      %68 = vsyncadd [#allocation8], %s67
      %s69 = sshll.u32 [#allocation9], 4
      %s70 = int_to_ptr.vmem [resolvable:$true] %s69
      %75 = dma.hbm_to_vmem [thread:$0]  %s5, 256, %s70, [#allocation8], 64, 64, 4
    $region25: #{tpu_custom_call.1} parent=1 // pred_fallthru
      _
    // Predicated region
    $region26: #{tpu_custom_call.1} parent=1 // pred_check
      _
    $region27: #{tpu_custom_call.1} parent=1 // pred_check_branch
      %77 = sbr.rel (0) target = $region29
    $region28: #{tpu_custom_call.1} parent=1 // pred_region
      %s79 = ssub.s32 256, 256
      %80 = vsyncadd [#allocation11], %s79
      %s81 = sshll.u32 [#allocation10], 4
      %s82 = int_to_ptr.vmem [resolvable:$true] %s81
      %87 = dma.hbm_to_vmem [thread:$0]  %s6, 256, %s82, [#allocation11], 64, 64, 4
    $region29: #{tpu_custom_call.1} parent=1 // pred_fallthru
      _
    // Predicated region
    $region30: #{tpu_custom_call.1} parent=1 // pred_check
      _
    $region31: #{tpu_custom_call.1} parent=1 // pred_check_branch
      %89 = sbr.rel (0) target = $region33
    $region32: #{tpu_custom_call.1} parent=1 // pred_region
      %s91 = ssub.s32 256, 256
      %92 = vsyncadd [#allocation11], %s91
      %s93 = sshll.u32 [#allocation12], 4
      %s94 = int_to_ptr.vmem [resolvable:$true] %s93
      %99 = dma.hbm_to_vmem [thread:$0]  %s7, 256, %s94, [#allocation11], 64, 64, 4
    $region33: #{tpu_custom_call.1} parent=1 // pred_fallthru
      _
    // Predicated region
    $region34: #{tpu_custom_call.1} parent=1 // pred_check
      _
    $region35: #{tpu_custom_call.1} parent=1 // pred_check_branch
      %101 = sbr.rel (0) target = $region37
    $region36: #{tpu_custom_call.1} parent=1 // pred_region
      _
    $region37: #{tpu_custom_call.1} parent=1 // pred_fallthru
      _
    // Predicated region
    $region38: #{tpu_custom_call.1} parent=1 // pred_check
      _
    $region39: #{tpu_custom_call.1} parent=1 // pred_check_branch
      %103 = sbr.rel (0) target = $region41
    $region40: #{tpu_custom_call.1} parent=1 // pred_region
      _
    $region41: #{tpu_custom_call.1} parent=1 // pred_fallthru
      _
    // Predicated region
    $region42: #{tpu_custom_call.1} parent=1 // pred_check
      _
    $region43: #{tpu_custom_call.1} parent=1 // pred_check_branch
      %105 = sbr.rel (0) target = $region45
    $region44: #{tpu_custom_call.1} parent=1 // pred_region
      _
    $region45: #{tpu_custom_call.1} parent=1 // pred_fallthru
      _
    // Predicated region
    $region46: #{tpu_custom_call.1} parent=1 // pred_check
      _
    $region47: #{tpu_custom_call.1} parent=1 // pred_check_branch
      %107 = sbr.rel (0) target = $region49
    $region48: #{tpu_custom_call.1} parent=1 // pred_region
      _
    $region49: #{tpu_custom_call.1} parent=1 // pred_fallthru
      _
    // Predicated region
    $region50: #{tpu_custom_call.1} parent=1 // pred_check
      _
    $region51: #{tpu_custom_call.1} parent=1 // pred_check_branch
      %109 = sbr.rel (0) target = $region53
    $region52: #{tpu_custom_call.1} parent=1 // pred_region
      _
    $region53: #{tpu_custom_call.1} parent=1 // pred_fallthru
      _
    // Predicated region
    $region54: #{tpu_custom_call.1} parent=1 // pred_check
      _
    $region55: #{tpu_custom_call.1} parent=1 // pred_check_branch
      %111 = sbr.rel (0) target = $region57
    $region56: #{tpu_custom_call.1} parent=1 // pred_region
      %112 = dma.done [#allocation3], 128
    $region57: #{tpu_custom_call.1} parent=1 // pred_fallthru
      _
    // Predicated region
    $region58: #{tpu_custom_call.1} parent=1 // pred_check
      _
    $region59: #{tpu_custom_call.1} parent=1 // pred_check_branch
      %114 = sbr.rel (0) target = $region61
    $region60: #{tpu_custom_call.1} parent=1 // pred_region
      %115 = dma.done [#allocation5], 128
    $region61: #{tpu_custom_call.1} parent=1 // pred_fallthru
      _
    // Predicated region
    $region62: #{tpu_custom_call.1} parent=1 // pred_check
      _
    $region63: #{tpu_custom_call.1} parent=1 // pred_check_branch
      %117 = sbr.rel (0) target = $region65
    $region64: #{tpu_custom_call.1} parent=1 // pred_region
      %118 = dma.done [#allocation5], 128
    $region65: #{tpu_custom_call.1} parent=1 // pred_fallthru
      _
    // Predicated region
    $region66: #{tpu_custom_call.1} parent=1 // pred_check
      _
    $region67: #{tpu_custom_call.1} parent=1 // pred_check_branch
      %120 = sbr.rel (0) target = $region69
    $region68: #{tpu_custom_call.1} parent=1 // pred_region
      %121 = dma.done [#allocation8], 128
    $region69: #{tpu_custom_call.1} parent=1 // pred_fallthru
      _
    // Predicated region
    $region70: #{tpu_custom_call.1} parent=1 // pred_check
      _
    $region71: #{tpu_custom_call.1} parent=1 // pred_check_branch
      %123 = sbr.rel (0) target = $region73
    $region72: #{tpu_custom_call.1} parent=1 // pred_region
      %124 = dma.done [#allocation8], 256
    $region73: #{tpu_custom_call.1} parent=1 // pred_fallthru
      _
    // Predicated region
    $region74: #{tpu_custom_call.1} parent=1 // pred_check
      _
    $region75: #{tpu_custom_call.1} parent=1 // pred_check_branch
      %126 = sbr.rel (0) target = $region77
    $region76: #{tpu_custom_call.1} parent=1 // pred_region
      %127 = dma.done [#allocation11], 256
    $region77: #{tpu_custom_call.1} parent=1 // pred_fallthru
      _
    // Predicated region
    $region78: #{tpu_custom_call.1} parent=1 // pred_check
      _
    $region79: #{tpu_custom_call.1} parent=1 // pred_check_branch
      %129 = sbr.rel (0) target = $region81
    $region80: #{tpu_custom_call.1} parent=1 // pred_region
      %130 = dma.done [#allocation11], 256
    $region81: #{tpu_custom_call.1} parent=1 // pred_fallthru
      _
    %v132 = vld [vmem:[#allocation2] sm:$0xff]
    %v133 = vpack.c.bf16 %v132, %v132
    %v134 = vld [vmem:[%s4] sm:$0xf]
    %v135 = vld [vmem:[%s4 + $0x4] sm:$0xf]
    %v136 = vld [vmem:[%s4 + $0x8] sm:$0xf]
    %v137 = vld [vmem:[%s4 + $0xc] sm:$0xf]
    %v138 = vld [vmem:[#allocation4] sm:$0xff]
    %v139 = vpack.c.bf16 %v138, %v138
    %v140 = vld [vmem:[#allocation9] sm:$0xf]
    %v141 = vld [vmem:[#allocation9 + $0x4] sm:$0xf]
    %v142 = vld [vmem:[#allocation9 + $0x8] sm:$0xf]
    %v143 = vld [vmem:[#allocation9 + $0xc] sm:$0xf]
    %v148 = vunpack.c.l.b16 %v140
    %v149 = vunpack.c.l.b16 %v141
    %v150 = vunpack.c.l.b16 %v142
    %v151 = vunpack.c.l.b16 %v143
    %v152 = vpack.c.b16 %v149, %v148
    %v153 = vpack.c.b16 %v151, %v150
    %vm156 = vcmask 261120
    %v158 = vsel %vm156, %v139, 0
    %160 = vmatprep.subr.bf16.mxu0 0
    %161 = vmatpush1.bf16.msra.mxu0 0
    %162 = vmatprep.subr.bf16.mxu0 0
    %163 = vmatpush1.bf16.msra.mxu0 0
    %164 = vmatprep.subr.bf16.mxu0 0
    %165 = vmatpush1.bf16.msra.mxu0 0
    %166 = vmatprep.subr.bf16.mxu0 0
    %167 = vmatpush1.bf16.msra.mxu0 0
    %168 = vmatprep.subr.bf16.mxu0 0
    %169 = vmatpush1.bf16.msra.mxu0 0
    %170 = vmatprep.subr.bf16.mxu0 0
    %171 = vmatpush1.bf16.msra.mxu0 0
    %172 = vmatprep.subr.bf16.mxu0 0
    %173 = vmatpush1.bf16.msra.mxu0 %v153
    %174 = vmatprep.subr.bf16.mxu0 0
    %175 = vmatpush1.bf16.msra.mxu0 %v152
    %176 = vmatprep.subr.bf16.mxu0 0
    %177 = vmatpush2.bf16.msra.mxu0 0
    %178 = vmatprep.subr.bf16.mxu0 0
    %179 = vmatpush2.bf16.msra.mxu0 0
    %180 = vmatprep.subr.bf16.mxu0 0
    %181 = vmatpush2.bf16.msra.mxu0 0
    %182 = vmatprep.subr.bf16.mxu0 0
    %183 = vmatpush2.bf16.msra.mxu0 0
    %184 = vmatprep.subr.bf16.mxu0 0
    %185 = vmatpush2.bf16.msra.mxu0 0
    %186 = vmatprep.subr.bf16.mxu0 0
    %187 = vmatpush2.bf16.msra.mxu0 0
    %188 = vmatprep.subr.bf16.mxu0 0
    %189 = vmatpush2.bf16.msra.mxu0 0
    %190 = vmatprep.subr.bf16.mxu0 0
    %191 = vmatpush2.bf16.msra.mxu0 0
    %192 = vmatprep.mubr.bf16.mxu0 0
    %193 = vmatmul.mubr.bf16.gmra.mxu0 %v158
    %v194 = vpop.f32.mrf.mxu0
    %v195 = vadd.f32 0.0, %v194
    %v196 = vpop.f32.mrf.mxu0
    %v197 = vpop.f32.mrf.mxu0
    %v198 = vpop.f32.mrf.mxu0
    %199 = vdwg.mxu0
    %v204 = vunpack.c.l.b16 %v134
    %v205 = vunpack.c.l.b16 %v135
    %v206 = vunpack.c.l.b16 %v136
    %v207 = vunpack.c.l.b16 %v137
    %v208 = vpack.c.b16 %v205, %v204
    %v209 = vpack.c.b16 %v207, %v206
    %v213 = vsel %vm156, %v133, 0
    %215 = vmatprep.subr.bf16.mxu0 0
    %216 = vmatpush1.bf16.msra.mxu0 0
    %217 = vmatprep.subr.bf16.mxu0 0
    %218 = vmatpush1.bf16.msra.mxu0 0
    %219 = vmatprep.subr.bf16.mxu0 0
    %220 = vmatpush1.bf16.msra.mxu0 0
    %221 = vmatprep.subr.bf16.mxu0 0
    %222 = vmatpush1.bf16.msra.mxu0 0
    %223 = vmatprep.subr.bf16.mxu0 0
    %224 = vmatpush1.bf16.msra.mxu0 0
    %225 = vmatprep.subr.bf16.mxu0 0
    %226 = vmatpush1.bf16.msra.mxu0 0
    %227 = vmatprep.subr.bf16.mxu0 0
    %228 = vmatpush1.bf16.msra.mxu0 %v209
    %229 = vmatprep.subr.bf16.mxu0 0
    %230 = vmatpush1.bf16.msra.mxu0 %v208
    %231 = vmatprep.subr.bf16.mxu0 0
    %232 = vmatpush2.bf16.msra.mxu0 0
    %233 = vmatprep.subr.bf16.mxu0 0
    %234 = vmatpush2.bf16.msra.mxu0 0
    %235 = vmatprep.subr.bf16.mxu0 0
    %236 = vmatpush2.bf16.msra.mxu0 0
    %237 = vmatprep.subr.bf16.mxu0 0
    %238 = vmatpush2.bf16.msra.mxu0 0
    %239 = vmatprep.subr.bf16.mxu0 0
    %240 = vmatpush2.bf16.msra.mxu0 0
    %241 = vmatprep.subr.bf16.mxu0 0
    %242 = vmatpush2.bf16.msra.mxu0 0
    %243 = vmatprep.subr.bf16.mxu0 0
    %244 = vmatpush2.bf16.msra.mxu0 0
    %245 = vmatprep.subr.bf16.mxu0 0
    %246 = vmatpush2.bf16.msra.mxu0 0
    %247 = vmatprep.mubr.bf16.mxu0 0
    %248 = vmatmul.mubr.bf16.gmra.mxu0 %v213
    %v249 = vpop.f32.mrf.mxu0
    %v250 = vadd.f32 %v195, %v249
    %v251 = vpop.f32.mrf.mxu0
    %v252 = vpop.f32.mrf.mxu0
    %v253 = vpop.f32.mrf.mxu0
    %254 = vdwg.mxu0
    %v255 = vld [vmem:[#allocation6] sm:$0xff]
    %v256 = vpack.c.bf16 %v255, %v255
    %v257 = vld [vmem:[#allocation10] sm:$0xf]
    %v258 = vld [vmem:[#allocation10 + $0x4] sm:$0xf]
    %v259 = vld [vmem:[#allocation10 + $0x8] sm:$0xf]
    %v260 = vld [vmem:[#allocation10 + $0xc] sm:$0xf]
    %v265 = vunpack.c.l.b16 %v257
    %v266 = vunpack.c.l.b16 %v258
    %v267 = vunpack.c.l.b16 %v259
    %v268 = vunpack.c.l.b16 %v260
    %v269 = vpack.c.b16 %v266, %v265
    %v270 = vpack.c.b16 %v268, %v267
    %v274 = vsel %vm156, %v256, 0
    %276 = vmatprep.subr.bf16.mxu0 0
    %277 = vmatpush1.bf16.msra.mxu0 0
    %278 = vmatprep.subr.bf16.mxu0 0
    %279 = vmatpush1.bf16.msra.mxu0 0
    %280 = vmatprep.subr.bf16.mxu0 0
    %281 = vmatpush1.bf16.msra.mxu0 0
    %282 = vmatprep.subr.bf16.mxu0 0
    %283 = vmatpush1.bf16.msra.mxu0 0
    %284 = vmatprep.subr.bf16.mxu0 0
    %285 = vmatpush1.bf16.msra.mxu0 0
    %286 = vmatprep.subr.bf16.mxu0 0
    %287 = vmatpush1.bf16.msra.mxu0 0
    %288 = vmatprep.subr.bf16.mxu0 0
    %289 = vmatpush1.bf16.msra.mxu0 %v270
    %290 = vmatprep.subr.bf16.mxu0 0
    %291 = vmatpush1.bf16.msra.mxu0 %v269
    %292 = vmatprep.subr.bf16.mxu0 0
    %293 = vmatpush2.bf16.msra.mxu0 0
    %294 = vmatprep.subr.bf16.mxu0 0
    %295 = vmatpush2.bf16.msra.mxu0 0
    %296 = vmatprep.subr.bf16.mxu0 0
    %297 = vmatpush2.bf16.msra.mxu0 0
    %298 = vmatprep.subr.bf16.mxu0 0
    %299 = vmatpush2.bf16.msra.mxu0 0
    %300 = vmatprep.subr.bf16.mxu0 0
    %301 = vmatpush2.bf16.msra.mxu0 0
    %302 = vmatprep.subr.bf16.mxu0 0
    %303 = vmatpush2.bf16.msra.mxu0 0
    %304 = vmatprep.subr.bf16.mxu0 0
    %305 = vmatpush2.bf16.msra.mxu0 0
    %306 = vmatprep.subr.bf16.mxu0 0
    %307 = vmatpush2.bf16.msra.mxu0 0
    %308 = vmatprep.mubr.bf16.mxu0 0
    %309 = vmatmul.mubr.bf16.gmra.mxu0 %v274
    %v310 = vpop.f32.mrf.mxu0
    %v311 = vadd.f32 0.0, %v310
    %v312 = vpop.f32.mrf.mxu0
    %v313 = vpop.f32.mrf.mxu0
    %v314 = vpop.f32.mrf.mxu0
    %315 = vdwg.mxu0
    %v316 = vadd.f32 %v250, %v311
    %v317 = vld [vmem:[#allocation7] sm:$0xff]
    %v318 = vpack.c.bf16 %v317, %v317
    %v319 = vld [vmem:[#allocation12] sm:$0xf]
    %v320 = vld [vmem:[#allocation12 + $0x4] sm:$0xf]
    %v321 = vld [vmem:[#allocation12 + $0x8] sm:$0xf]
    %v322 = vld [vmem:[#allocation12 + $0xc] sm:$0xf]
    %v327 = vunpack.c.l.b16 %v319
    %v328 = vunpack.c.l.b16 %v320
    %v329 = vunpack.c.l.b16 %v321
    %v330 = vunpack.c.l.b16 %v322
    %v331 = vpack.c.b16 %v328, %v327
    %v332 = vpack.c.b16 %v330, %v329
    %v336 = vsel %vm156, %v318, 0
    %338 = vmatprep.subr.bf16.mxu0 0
    %339 = vmatpush1.bf16.msra.mxu0 0
    %340 = vmatprep.subr.bf16.mxu0 0
    %341 = vmatpush1.bf16.msra.mxu0 0
    %342 = vmatprep.subr.bf16.mxu0 0
    %343 = vmatpush1.bf16.msra.mxu0 0
    %344 = vmatprep.subr.bf16.mxu0 0
    %345 = vmatpush1.bf16.msra.mxu0 0
    %346 = vmatprep.subr.bf16.mxu0 0
    %347 = vmatpush1.bf16.msra.mxu0 0
    %348 = vmatprep.subr.bf16.mxu0 0
    %349 = vmatpush1.bf16.msra.mxu0 0
    %350 = vmatprep.subr.bf16.mxu0 0
    %351 = vmatpush1.bf16.msra.mxu0 %v332
    %352 = vmatprep.subr.bf16.mxu0 0
    %353 = vmatpush1.bf16.msra.mxu0 %v331
    %354 = vmatprep.subr.bf16.mxu0 0
    %355 = vmatpush2.bf16.msra.mxu0 0
    %356 = vmatprep.subr.bf16.mxu0 0
    %357 = vmatpush2.bf16.msra.mxu0 0
    %358 = vmatprep.subr.bf16.mxu0 0
    %359 = vmatpush2.bf16.msra.mxu0 0
    %360 = vmatprep.subr.bf16.mxu0 0
    %361 = vmatpush2.bf16.msra.mxu0 0
    %362 = vmatprep.subr.bf16.mxu0 0
    %363 = vmatpush2.bf16.msra.mxu0 0
    %364 = vmatprep.subr.bf16.mxu0 0
    %365 = vmatpush2.bf16.msra.mxu0 0
    %366 = vmatprep.subr.bf16.mxu0 0
    %367 = vmatpush2.bf16.msra.mxu0 0
    %368 = vmatprep.subr.bf16.mxu0 0
    %369 = vmatpush2.bf16.msra.mxu0 0
    %370 = vmatprep.mubr.bf16.mxu0 0
    %371 = vmatmul.mubr.bf16.gmra.mxu0 %v336
    %v372 = vpop.f32.mrf.mxu0
    %v373 = vadd.f32 0.0, %v372
    %v374 = vpop.f32.mrf.mxu0
    %v375 = vpop.f32.mrf.mxu0
    %v376 = vpop.f32.mrf.mxu0
    %377 = vdwg.mxu0
    %v378 = vadd.f32 %v316, %v373
    %v379 = vld [vmem:[%s8] sm:$0x1]
    %v381 = vlaneseq
    %v382 = vshrl.u32 %v381, 7
    %v383 = vsub.s32 0, %v382
    %v384 = vrot.slane %v379, %v383
    %v386 = vadd.f32 %v378, %v384
    %v387 = vmax.f32 %v386, 0.0
    %v388 = vpack.c.bf16 %v387, %v387
    %v389 = vld [vmem:[%s9] sm:$0xf]
    %v390 = vld [vmem:[%s9 + $0x4] sm:$0xf]
    %v391 = vld [vmem:[%s9 + $0x8] sm:$0xf]
    %v392 = vld [vmem:[%s9 + $0xc] sm:$0xf]
    %v393 = vld [vmem:[%s9 + $0x10] sm:$0xf]
    %v394 = vld [vmem:[%s9 + $0x14] sm:$0xf]
    %v395 = vld [vmem:[%s9 + $0x18] sm:$0xf]
    %v396 = vld [vmem:[%s9 + $0x1c] sm:$0xf]
    %v397 = vld [vmem:[%s9 + $0x20] sm:$0xf]
    %v398 = vld [vmem:[%s9 + $0x24] sm:$0xf]
    %v399 = vld [vmem:[%s9 + $0x28] sm:$0xf]
    %v400 = vld [vmem:[%s9 + $0x2c] sm:$0xf]
    %v401 = vld [vmem:[%s9 + $0x30] sm:$0xf]
    %v402 = vld [vmem:[%s9 + $0x34] sm:$0xf]
    %v403 = vld [vmem:[%s9 + $0x38] sm:$0xf]
    %v404 = vld [vmem:[%s9 + $0x3c] sm:$0xf]
    %v405 = vld [vmem:[%s10] sm:$0x1]
    %v407 = vlaneseq
    %v408 = vshrl.u32 %v407, 7
    %v409 = vsub.s32 0, %v408
    %v410 = vrot.slane %v405, %v409
    %v428 = vunpack.c.l.b16 %v389
    %v429 = vunpack.c.l.b16 %v390
    %v430 = vunpack.c.l.b16 %v391
    %v431 = vunpack.c.l.b16 %v392
    %v432 = vunpack.c.l.b16 %v393
    %v433 = vunpack.c.l.b16 %v394
    %v434 = vunpack.c.l.b16 %v395
    %v435 = vunpack.c.l.b16 %v396
    %v436 = vunpack.c.l.b16 %v397
    %v437 = vunpack.c.l.b16 %v398
    %v438 = vunpack.c.l.b16 %v399
    %v439 = vunpack.c.l.b16 %v400
    %v440 = vunpack.c.l.b16 %v401
    %v441 = vunpack.c.l.b16 %v402
    %v442 = vunpack.c.l.b16 %v403
    %v443 = vunpack.c.l.b16 %v404
    %v444 = vpack.c.b16 %v429, %v428
    %v445 = vpack.c.b16 %v431, %v430
    %v446 = vpack.c.b16 %v433, %v432
    %v447 = vpack.c.b16 %v435, %v434
    %v448 = vpack.c.b16 %v437, %v436
    %v449 = vpack.c.b16 %v439, %v438
    %v450 = vpack.c.b16 %v441, %v440
    %v451 = vpack.c.b16 %v443, %v442
    %460 = vmatprep.subr.bf16.mxu0 0
    %461 = vmatpush1.bf16.msra.mxu0 %v451
    %462 = vmatprep.subr.bf16.mxu0 0
    %463 = vmatpush1.bf16.msra.mxu0 %v450
    %464 = vmatprep.subr.bf16.mxu0 0
    %465 = vmatpush1.bf16.msra.mxu0 %v449
    %466 = vmatprep.subr.bf16.mxu0 0
    %467 = vmatpush1.bf16.msra.mxu0 %v448
    %468 = vmatprep.subr.bf16.mxu0 0
    %469 = vmatpush1.bf16.msra.mxu0 %v447
    %470 = vmatprep.subr.bf16.mxu0 0
    %471 = vmatpush1.bf16.msra.mxu0 %v446
    %472 = vmatprep.subr.bf16.mxu0 0
    %473 = vmatpush1.bf16.msra.mxu0 %v445
    %474 = vmatprep.subr.bf16.mxu0 0
    %475 = vmatpush1.bf16.msra.mxu0 %v444
    %476 = vmatprep.subr.bf16.mxu0 0
    %477 = vmatpush2.bf16.msra.mxu0 0
    %478 = vmatprep.subr.bf16.mxu0 0
    %479 = vmatpush2.bf16.msra.mxu0 0
    %480 = vmatprep.subr.bf16.mxu0 0
    %481 = vmatpush2.bf16.msra.mxu0 0
    %482 = vmatprep.subr.bf16.mxu0 0
    %483 = vmatpush2.bf16.msra.mxu0 0
    %484 = vmatprep.subr.bf16.mxu0 0
    %485 = vmatpush2.bf16.msra.mxu0 0
    %486 = vmatprep.subr.bf16.mxu0 0
    %487 = vmatpush2.bf16.msra.mxu0 0
    %488 = vmatprep.subr.bf16.mxu0 0
    %489 = vmatpush2.bf16.msra.mxu0 0
    %490 = vmatprep.subr.bf16.mxu0 0
    %491 = vmatpush2.bf16.msra.mxu0 0
    %492 = vmatprep.mubr.bf16.mxu0 0
    %493 = vmatmul.mubr.bf16.gmra.mxu0 %v388
    %v494 = vpop.f32.mrf.mxu0
    %v495 = vadd.f32 %v410, %v494
    %v496 = vpop.f32.mrf.mxu0
    %v497 = vpop.f32.mrf.mxu0
    %v498 = vpop.f32.mrf.mxu0
    %499 = vdwg.mxu0
    %v500 = vmax.f32 %v495, 0.0
    %v501 = vpack.c.bf16 %v500, %v500
    %v502 = vld [vmem:[%s11] sm:$0xf]
    %v503 = vld [vmem:[%s11 + $0x4] sm:$0xf]
    %v504 = vld [vmem:[%s11 + $0x8] sm:$0xf]
    %v505 = vld [vmem:[%s11 + $0xc] sm:$0xf]
    %v506 = vld [vmem:[%s11 + $0x10] sm:$0xf]
    %v507 = vld [vmem:[%s11 + $0x14] sm:$0xf]
    %v508 = vld [vmem:[%s11 + $0x18] sm:$0xf]
    %v509 = vld [vmem:[%s11 + $0x1c] sm:$0xf]
    %v510 = vld [vmem:[%s11 + $0x20] sm:$0xf]
    %v511 = vld [vmem:[%s11 + $0x24] sm:$0xf]
    %v512 = vld [vmem:[%s11 + $0x28] sm:$0xf]
    %v513 = vld [vmem:[%s11 + $0x2c] sm:$0xf]
    %v514 = vld [vmem:[%s11 + $0x30] sm:$0xf]
    %v515 = vld [vmem:[%s11 + $0x34] sm:$0xf]
    %v516 = vld [vmem:[%s11 + $0x38] sm:$0xf]
    %v517 = vld [vmem:[%s11 + $0x3c] sm:$0xf]
    %v518 = vld [vmem:[%s12] sm:$0x1]
    %v520 = vlaneseq
    %v521 = vshrl.u32 %v520, 7
    %v522 = vsub.s32 0, %v521
    %v523 = vrot.slane %v518, %v522
    %v541 = vunpack.c.l.b16 %v502
    %v542 = vunpack.c.l.b16 %v503
    %v543 = vunpack.c.l.b16 %v504
    %v544 = vunpack.c.l.b16 %v505
    %v545 = vunpack.c.l.b16 %v506
    %v546 = vunpack.c.l.b16 %v507
    %v547 = vunpack.c.l.b16 %v508
    %v548 = vunpack.c.l.b16 %v509
    %v549 = vunpack.c.l.b16 %v510
    %v550 = vunpack.c.l.b16 %v511
    %v551 = vunpack.c.l.b16 %v512
    %v552 = vunpack.c.l.b16 %v513
    %v553 = vunpack.c.l.b16 %v514
    %v554 = vunpack.c.l.b16 %v515
    %v555 = vunpack.c.l.b16 %v516
    %v556 = vunpack.c.l.b16 %v517
    %v557 = vpack.c.b16 %v542, %v541
    %v558 = vpack.c.b16 %v544, %v543
    %v559 = vpack.c.b16 %v546, %v545
    %v560 = vpack.c.b16 %v548, %v547
    %v561 = vpack.c.b16 %v550, %v549
    %v562 = vpack.c.b16 %v552, %v551
    %v563 = vpack.c.b16 %v554, %v553
    %v564 = vpack.c.b16 %v556, %v555
    %573 = vmatprep.subr.bf16.mxu0 0
    %574 = vmatpush1.bf16.msra.mxu0 %v564
    %575 = vmatprep.subr.bf16.mxu0 0
    %576 = vmatpush1.bf16.msra.mxu0 %v563
    %577 = vmatprep.subr.bf16.mxu0 0
    %578 = vmatpush1.bf16.msra.mxu0 %v562
    %579 = vmatprep.subr.bf16.mxu0 0
    %580 = vmatpush1.bf16.msra.mxu0 %v561
    %581 = vmatprep.subr.bf16.mxu0 0
    %582 = vmatpush1.bf16.msra.mxu0 %v560
    %583 = vmatprep.subr.bf16.mxu0 0
    %584 = vmatpush1.bf16.msra.mxu0 %v559
    %585 = vmatprep.subr.bf16.mxu0 0
    %586 = vmatpush1.bf16.msra.mxu0 %v558
    %587 = vmatprep.subr.bf16.mxu0 0
    %588 = vmatpush1.bf16.msra.mxu0 %v557
    %589 = vmatprep.subr.bf16.mxu0 0
    %590 = vmatpush2.bf16.msra.mxu0 0
    %591 = vmatprep.subr.bf16.mxu0 0
    %592 = vmatpush2.bf16.msra.mxu0 0
    %593 = vmatprep.subr.bf16.mxu0 0
    %594 = vmatpush2.bf16.msra.mxu0 0
    %595 = vmatprep.subr.bf16.mxu0 0
    %596 = vmatpush2.bf16.msra.mxu0 0
    %597 = vmatprep.subr.bf16.mxu0 0
    %598 = vmatpush2.bf16.msra.mxu0 0
    %599 = vmatprep.subr.bf16.mxu0 0
    %600 = vmatpush2.bf16.msra.mxu0 0
    %601 = vmatprep.subr.bf16.mxu0 0
    %602 = vmatpush2.bf16.msra.mxu0 0
    %603 = vmatprep.subr.bf16.mxu0 0
    %604 = vmatpush2.bf16.msra.mxu0 0
    %605 = vmatprep.mubr.bf16.mxu0 0
    %606 = vmatmul.mubr.bf16.gmra.mxu0 %v501
    %v607 = vpop.f32.mrf.mxu0
    %v608 = vadd.f32 %v523, %v607
    %v609 = vpop.f32.mrf.mxu0
    %v610 = vpop.f32.mrf.mxu0
    %v611 = vpop.f32.mrf.mxu0
    %612 = vdwg.mxu0
    %vm613 = vcmask 31744
    %614 = vst.msk [vmem:[%s13] sm:$0xff] %vm613, %v608
    // Predicated region
    $region82: #{tpu_custom_call.1} parent=1 // pred_check
      _
    $region83: #{tpu_custom_call.1} parent=1 // pred_check_branch
      %616 = sbr.rel (0) target = $region85
    $region84: #{tpu_custom_call.1} parent=1 // pred_region
      _
    $region85: #{tpu_custom_call.1} parent=1 // pred_fallthru
      _
    // Predicated region
    $region86: #{tpu_custom_call.1} parent=1 // pred_check
      _
    $region87: #{tpu_custom_call.1} parent=1 // pred_check_branch
      %618 = sbr.rel (0) target = $region89
    $region88: #{tpu_custom_call.1} parent=1 // pred_region
      _
    $region89: #{tpu_custom_call.1} parent=1 // pred_fallthru
      _
    %619 = vsyncpa [#allocation3], 1
    %620 = vsyncpa [#allocation5], 1
    %621 = vsyncpa [#allocation8], 1
    %622 = vsyncpa [#allocation11], 1

</llo_original>
